<compile_context>
chip_gen: v6e
topology: v6e:2x2x1
jax: 0.10.0
libtpu: 0.0.40
codegen_flags: <defaults>
</compile_context>

<pallas_src>
import jax
import jax.numpy as jnp
from jax import lax
from jax.experimental import pallas as pl
from jax.experimental.pallas import tpu as pltpu


def mlp_kernel(x_ref,
               w1_ref, b1_ref,
               w2_ref, b2_ref,
               w3_ref, b3_ref,
               w4_ref, b4_ref,
               o_ref):
    x = x_ref[...]

    # Linear(in, 64) [BN folded into w1/b1] + ReLU   (Dropout = identity, eval)
    h = jnp.dot(x, w1_ref[...], preferred_element_type=jnp.float32) + b1_ref[...]
    h = jnp.maximum(h, 0.0)

    # Linear(64, 32) + ReLU
    h = jnp.dot(h, w2_ref[...], preferred_element_type=jnp.float32) + b2_ref[...]
    h = jnp.maximum(h, 0.0)

    # Linear(32, 16) [BN folded into w3/b3] + ReLU
    h = jnp.dot(h, w3_ref[...], preferred_element_type=jnp.float32) + b3_ref[...]
    h = jnp.maximum(h, 0.0)

    # Final Linear(16, 1), produced lane-dense:
    #   (1,16) . (TB,16)^T -> (1, TB)   (wide-N MXU op, unmasked full-lane store)
    row = lax.dot_general(w4_ref[...], h,
                          dimension_numbers=(((1,), (1,)), ((), ())),
                          preferred_element_type=jnp.float32)
    o_ref[...] = row + b4_ref[...]


def _round_up(n, m):
    return ((n + m - 1) // m) * m


def _lane_pad(n):
    return _round_up(n, 128)


def mlp_forward(x, params, *, tile_batch=4096, stream_bf16=False):
    """x: (B, input_length) f32.  params: dict of weights (see init_params)."""
    B, in_len = x.shape

    # ---- Fold BatchNorm (running stats) into the preceding Linear ----------
    def bn_fold(w, b, gamma, beta, mean, var, eps=1e-5):
        s = gamma / jnp.sqrt(var + eps)          # per-output-feature scale
        return w * s[None, :], b * s + (beta - mean * s)

    w1, b1 = bn_fold(params["w1"], params["b1"],
                     params["bn1_gamma"], params["bn1_beta"],
                     params["bn1_mean"], params["bn1_var"])
    w3, b3 = bn_fold(params["w3"], params["b3"],
                     params["bn3_gamma"], params["bn3_beta"],
                     params["bn3_mean"], params["bn3_var"])
    w2, b2 = params["w2"], params["b2"]
    w4, b4 = params["w4"], params["b4"]

    if stream_bf16:
        # x is the only large HBM stream; bf16 halves its bytes. Accumulation
        # stays f32 inside the kernel via preferred_element_type.
        x = x.astype(jnp.bfloat16)
        w1 = w1.astype(jnp.bfloat16)

    weights = (
        w1, b1[None, :],
        w2, b2[None, :],
        w3, b3[None, :],
        w4.T, b4[None, :],       # w4 passed as (1, 16); b4 as (1, 1)
    )

    # ---- Batch tile selection (largest TB fitting a conservative budget) ---
    x_elem = 2 if stream_bf16 else 4
    per_row_bytes = (
        2 * _lane_pad(in_len) * x_elem       # double-buffered x tile
        + 3 * 128 * 4                        # h1/h2/h3 f32 intermediates (lane padded)
        + 2 * 8 * 4                          # (1,TB) -> (8,TB) output, double-buffered
    )
    param_bytes = 2 * sum(                   # weights resident, default double-buffered
        _round_up(w.shape[0], 8) * _lane_pad(w.shape[1]) * w.dtype.itemsize
        for w in weights)
    budget = (40 << 20) - param_bytes - (4 << 20)   # headroom even on v7x (64 MiB/TC)
    tb_cap = max(128, (budget // per_row_bytes) // 128 * 128)
    tb_cap = min(tb_cap, _round_up(tile_batch, 128))

    if B <= tb_cap:
        TB = _round_up(B, 8)                 # single tile (out block == full dim)
    else:
        TB = tb_cap                          # multiple of 128 -> lane-dense out blocks
    num_tiles = (B + TB - 1) // TB           # ragged last block handled by Pallas

    # x / output are tiled over the batch; weights/biases keep constant block
    # indices so they stay resident in VMEM across grid steps.
    in_specs = [pl.BlockSpec((TB, in_len), lambda i: (i, 0))]
    in_specs += [pl.BlockSpec(w.shape, lambda i: (0, 0)) for w in weights]
    out_spec = pl.BlockSpec((1, TB), lambda i: (0, i))

    vmem_limit = param_bytes + TB * per_row_bytes + (8 << 20)
    vmem_limit = int(min(max(vmem_limit, 16 << 20), 48 << 20))

    out_row = pl.pallas_call(
        mlp_kernel,
        out_shape=jax.ShapeDtypeStruct((1, num_tiles * TB), jnp.float32),
        grid_spec=pltpu.PrefetchScalarGridSpec(
            num_scalar_prefetch=0,
            grid=(num_tiles,),
            in_specs=in_specs,
            out_specs=out_spec,
        ),
        compiler_params=pltpu.CompilerParams(
            dimension_semantics=("parallel",),   # megacore sharding where available
            vmem_limit_bytes=vmem_limit,
        ),
    )(x, *weights)

    # Lane-dense (1, num_tiles*TB) row -> (B, 1) column; tail garbage (from the
    # ragged last block) is sliced off. Rows are independent, so this is exact.
    return out_row.reshape(-1, 1)[:B]


def init_params(key, input_length):
    """Deterministic parameter init (xavier-uniform weights, bias=0.01,
    BatchNorm at PyTorch defaults: gamma=1, beta=0, running mean=0, var=1)."""
    dims = [(input_length, 64), (64, 32), (32, 16), (16, 1)]
    params = {}
    keys = jax.random.split(key, len(dims))
    for idx, ((fan_in, fan_out), k) in enumerate(zip(dims, keys), start=1):
        bound = jnp.sqrt(6.0 / (fan_in + fan_out))
        params[f"w{idx}"] = jax.random.uniform(
            k, (fan_in, fan_out), jnp.float32, minval=-bound, maxval=bound)
        params[f"b{idx}"] = jnp.full((fan_out,), 0.01, jnp.float32)
    for name, feat in (("bn1", 64), ("bn3", 16)):
        params[f"{name}_gamma"] = jnp.ones((feat,), jnp.float32)
        params[f"{name}_beta"] = jnp.zeros((feat,), jnp.float32)
        params[f"{name}_mean"] = jnp.zeros((feat,), jnp.float32)
        params[f"{name}_var"] = jnp.ones((feat,), jnp.float32)
    return params


def reference_forward(x, params):
    """Plain-JAX reference (eval-mode semantics) for a sanity check."""
    def bn(h, g, b, m, v, eps=1e-5):
        return (h - m) / jnp.sqrt(v + eps) * g + b

    h = x @ params["w1"] + params["b1"]
    h = bn(h, params["bn1_gamma"], params["bn1_beta"],
           params["bn1_mean"], params["bn1_var"])
    h = jnp.maximum(h, 0.0)
    h = jnp.maximum(h @ params["w2"] + params["b2"], 0.0)
    h = h @ params["w3"] + params["b3"]
    h = bn(h, params["bn3_gamma"], params["bn3_beta"],
           params["bn3_mean"], params["bn3_var"])
    h = jnp.maximum(h, 0.0)
    return h @ params["w4"] + params["b4"]


if __name__ == "__main__":
    input_length = 32
    key = jax.random.PRNGKey(0)
    kx, kp = jax.random.split(key)
    params = init_params(kp, input_length)

    # Small, single-tile path.
    x_small = jax.random.normal(kx, (8, input_length), dtype=jnp.float32)
    out_small = jax.block_until_ready(mlp_forward(x_small, params))
    ref_small = reference_forward(x_small, params)
    assert out_small.shape == (8, 1)
    # BN folding changes f32 rounding order slightly vs the unfused reference.
    assert jnp.allclose(out_small, ref_small, atol=1e-4, rtol=1e-4), \
        "small-batch mismatch vs JAX reference"

    # Multi-tile path with a ragged last block (no full-array pad of x) and
    # lane-dense (1, TB) output blocks.
    x_big = jax.random.normal(kx, (300, input_length), dtype=jnp.float32)
    out_big = jax.block_until_ready(mlp_forward(x_big, params, tile_batch=128))
    ref_big = reference_forward(x_big, params)
    assert out_big.shape == (300, 1)
    assert jnp.allclose(out_big, ref_big, atol=1e-4, rtol=1e-4), \
        "multi-tile mismatch vs JAX reference"

    print("KERNEL_OK")
</pallas_src>

<mosaic_0001>
module attributes {stable_mosaic.version = 11 : i64} {
  func.func @mlp_kernel(%arg0: i32, %arg1: memref<8x32xf32, #tpu.memory_space<vmem>>, %arg2: memref<32x64xf32, #tpu.memory_space<vmem>>, %arg3: memref<1x64xf32, #tpu.memory_space<vmem>>, %arg4: memref<64x32xf32, #tpu.memory_space<vmem>>, %arg5: memref<1x32xf32, #tpu.memory_space<vmem>>, %arg6: memref<32x16xf32, #tpu.memory_space<vmem>>, %arg7: memref<1x16xf32, #tpu.memory_space<vmem>>, %arg8: memref<1x16xf32, #tpu.memory_space<vmem>>, %arg9: memref<1x1xf32, #tpu.memory_space<vmem>>, %arg10: memref<1x8xf32, #tpu.memory_space<vmem>>) attributes {dimension_semantics = [#tpu.dimension_semantics<parallel>], iteration_bounds = array<i64: 1>, scalar_prefetch = 0 : i64, scratch_operands = 0 : i64, tpu.core_type = #tpu.core_type<tc>, window_params = [{transform_indices = @transform_0, window_bounds = array<i64: 8, 32>}, {pipeline_mode = #tpu.pipeline_mode<synchronous>, transform_indices = @transform_1, window_bounds = array<i64: 32, 64>}, {pipeline_mode = #tpu.pipeline_mode<synchronous>, transform_indices = @transform_2, window_bounds = array<i64: 1, 64>}, {pipeline_mode = #tpu.pipeline_mode<synchronous>, transform_indices = @transform_3, window_bounds = array<i64: 64, 32>}, {pipeline_mode = #tpu.pipeline_mode<synchronous>, transform_indices = @transform_4, window_bounds = array<i64: 1, 32>}, {pipeline_mode = #tpu.pipeline_mode<synchronous>, transform_indices = @transform_5, window_bounds = array<i64: 32, 16>}, {pipeline_mode = #tpu.pipeline_mode<synchronous>, transform_indices = @transform_6, window_bounds = array<i64: 1, 16>}, {pipeline_mode = #tpu.pipeline_mode<synchronous>, transform_indices = @transform_7, window_bounds = array<i64: 1, 16>}, {pipeline_mode = #tpu.pipeline_mode<synchronous>, transform_indices = @transform_8, window_bounds = array<i64: 1, 1>}, {transform_indices = @transform_9, window_bounds = array<i64: 1, 8>}]} {
    %c0 = arith.constant 0 : index
    %c0_0 = arith.constant 0 : index
    %0 = vector.load %arg1[%c0, %c0_0] : memref<8x32xf32, #tpu.memory_space<vmem>>, vector<8x32xf32>
    %c0_1 = arith.constant 0 : index
    %c0_2 = arith.constant 0 : index
    %1 = vector.load %arg2[%c0_1, %c0_2] : memref<32x64xf32, #tpu.memory_space<vmem>>, vector<32x64xf32>
    %cst = arith.constant dense<0.000000e+00> : vector<8x64xf32>
    %2 = tpu.matmul %0, %1, %cst {dimension_numbers = #tpu.dot_dimension_numbers<[1], [0], [0], [1], [0, 0, 1, 1], [], []>} : vector<8x32xf32>, vector<32x64xf32>, vector<8x64xf32> -> vector<8x64xf32>
    %c0_3 = arith.constant 0 : index
    %c0_4 = arith.constant 0 : index
    %3 = vector.load %arg3[%c0_3, %c0_4] : memref<1x64xf32, #tpu.memory_space<vmem>>, vector<1x64xf32>
    %4 = vector.broadcast %3 : vector<1x64xf32> to vector<8x64xf32>
    %5 = arith.addf %2, %4 : vector<8x64xf32>
    %cst_5 = arith.constant 0.000000e+00 : f32
    %6 = vector.broadcast %cst_5 : f32 to vector<8x64xf32>
    %7 = arith.maximumf %5, %6 : vector<8x64xf32>
    %c0_6 = arith.constant 0 : index
    %c0_7 = arith.constant 0 : index
    %8 = vector.load %arg4[%c0_6, %c0_7] : memref<64x32xf32, #tpu.memory_space<vmem>>, vector<64x32xf32>
    %cst_8 = arith.constant dense<0.000000e+00> : vector<8x32xf32>
    %9 = tpu.matmul %7, %8, %cst_8 {dimension_numbers = #tpu.dot_dimension_numbers<[1], [0], [0], [1], [0, 0, 1, 1], [], []>} : vector<8x64xf32>, vector<64x32xf32>, vector<8x32xf32> -> vector<8x32xf32>
    %c0_9 = arith.constant 0 : index
    %c0_10 = arith.constant 0 : index
    %10 = vector.load %arg5[%c0_9, %c0_10] : memref<1x32xf32, #tpu.memory_space<vmem>>, vector<1x32xf32>
    %11 = vector.broadcast %10 : vector<1x32xf32> to vector<8x32xf32>
    %12 = arith.addf %9, %11 : vector<8x32xf32>
    %cst_11 = arith.constant 0.000000e+00 : f32
    %13 = vector.broadcast %cst_11 : f32 to vector<8x32xf32>
    %14 = arith.maximumf %12, %13 : vector<8x32xf32>
    %c0_12 = arith.constant 0 : index
    %c0_13 = arith.constant 0 : index
    %15 = vector.load %arg6[%c0_12, %c0_13] : memref<32x16xf32, #tpu.memory_space<vmem>>, vector<32x16xf32>
    %cst_14 = arith.constant dense<0.000000e+00> : vector<8x16xf32>
    %16 = tpu.matmul %14, %15, %cst_14 {dimension_numbers = #tpu.dot_dimension_numbers<[1], [0], [0], [1], [0, 0, 1, 1], [], []>} : vector<8x32xf32>, vector<32x16xf32>, vector<8x16xf32> -> vector<8x16xf32>
    %c0_15 = arith.constant 0 : index
    %c0_16 = arith.constant 0 : index
    %17 = vector.load %arg7[%c0_15, %c0_16] : memref<1x16xf32, #tpu.memory_space<vmem>>, vector<1x16xf32>
    %18 = vector.broadcast %17 : vector<1x16xf32> to vector<8x16xf32>
    %19 = arith.addf %16, %18 : vector<8x16xf32>
    %cst_17 = arith.constant 0.000000e+00 : f32
    %20 = vector.broadcast %cst_17 : f32 to vector<8x16xf32>
    %21 = arith.maximumf %19, %20 : vector<8x16xf32>
    %c0_18 = arith.constant 0 : index
    %c0_19 = arith.constant 0 : index
    %22 = vector.load %arg8[%c0_18, %c0_19] : memref<1x16xf32, #tpu.memory_space<vmem>>, vector<1x16xf32>
    %cst_20 = arith.constant dense<0.000000e+00> : vector<1x8xf32>
    %23 = tpu.matmul %22, %21, %cst_20 {dimension_numbers = #tpu.dot_dimension_numbers<[1], [1], [0], [0], [0, 0, 1, 0], [], []>} : vector<1x16xf32>, vector<8x16xf32>, vector<1x8xf32> -> vector<1x8xf32>
    %c0_21 = arith.constant 0 : index
    %c0_22 = arith.constant 0 : index
    %24 = vector.load %arg9[%c0_21, %c0_22] : memref<1x1xf32, #tpu.memory_space<vmem>>, vector<1x1xf32>
    %25 = vector.broadcast %24 : vector<1x1xf32> to vector<1x8xf32>
    %26 = arith.addf %23, %25 : vector<1x8xf32>
    %c0_23 = arith.constant 0 : index
    %c0_24 = arith.constant 0 : index
    %27 = vector.load %arg10[%c0_23, %c0_24] : memref<1x8xf32, #tpu.memory_space<vmem>>, vector<1x8xf32>
    tpu.vector_store %arg10[%c0_23, %c0_24], %26 {strides = array<i32>} : memref<1x8xf32, #tpu.memory_space<vmem>>, vector<1x8xf32>,
    return
  }
  func.func @transform_0(%arg0: i32) -> (i32, i32) {
    %c0_i32 = arith.constant 0 : i32
    %c0_i32_0 = arith.constant 0 : i32
    return %arg0, %c0_i32 : i32, i32
  }
  func.func @transform_1(%arg0: i32) -> (i32, i32) {
    %c0_i32 = arith.constant 0 : i32
    %c0_i32_0 = arith.constant 0 : i32
    %c0_i32_1 = arith.constant 0 : i32
    return %c0_i32, %c0_i32_0 : i32, i32
  }
  func.func @transform_2(%arg0: i32) -> (i32, i32) {
    %c0_i32 = arith.constant 0 : i32
    %c0_i32_0 = arith.constant 0 : i32
    %c0_i32_1 = arith.constant 0 : i32
    return %c0_i32, %c0_i32_0 : i32, i32
  }
  func.func @transform_3(%arg0: i32) -> (i32, i32) {
    %c0_i32 = arith.constant 0 : i32
    %c0_i32_0 = arith.constant 0 : i32
    %c0_i32_1 = arith.constant 0 : i32
    return %c0_i32, %c0_i32_0 : i32, i32
  }
  func.func @transform_4(%arg0: i32) -> (i32, i32) {
    %c0_i32 = arith.constant 0 : i32
    %c0_i32_0 = arith.constant 0 : i32
    %c0_i32_1 = arith.constant 0 : i32
    return %c0_i32, %c0_i32_0 : i32, i32
  }
  func.func @transform_5(%arg0: i32) -> (i32, i32) {
    %c0_i32 = arith.constant 0 : i32
    %c0_i32_0 = arith.constant 0 : i32
    %c0_i32_1 = arith.constant 0 : i32
    return %c0_i32, %c0_i32_0 : i32, i32
  }
  func.func @transform_6(%arg0: i32) -> (i32, i32) {
    %c0_i32 = arith.constant 0 : i32
    %c0_i32_0 = arith.constant 0 : i32
    %c0_i32_1 = arith.constant 0 : i32
    return %c0_i32, %c0_i32_0 : i32, i32
  }
  func.func @transform_7(%arg0: i32) -> (i32, i32) {
    %c0_i32 = arith.constant 0 : i32
    %c0_i32_0 = arith.constant 0 : i32
    %c0_i32_1 = arith.constant 0 : i32
    return %c0_i32, %c0_i32_0 : i32, i32
  }
  func.func @transform_8(%arg0: i32) -> (i32, i32) {
    %c0_i32 = arith.constant 0 : i32
    %c0_i32_0 = arith.constant 0 : i32
    %c0_i32_1 = arith.constant 0 : i32
    return %c0_i32, %c0_i32_0 : i32, i32
  }
  func.func @transform_9(%arg0: i32) -> (i32, i32) {
    %c0_i32 = arith.constant 0 : i32
    %c0_i32_0 = arith.constant 0 : i32
    return %c0_i32, %arg0 : i32, i32
  }
}

</mosaic_0001>

<llo_original>
// kernel: tpu_custom_call.1
$region0: #{tpu_custom_call.1}
  #allocation0 [shape = 'u32[]', space=smem, size = 0x4, offset = 0x4, fixed_abs, tag = 'smem constant byte address 0x4 - core index']
  #allocation1 [shape = 'u32[144,128]{1,0:T(1,128)}', space=vmem, size = 0x12000, scoped, tag = 'internal scratch']
  #allocation2 [shape = 'f32[1,1]{1,0:T(1,128)S(1)}', space=vmem, size = 0x200, scoped, tag = 'scoped memory for tpu_custom_call.1']
  %s0 = inlined_call_operand.vmem [shape: f32[8,32], index: 0, kind: input, shape index: {}]
  %s1 = inlined_call_operand.vmem [shape: f32[32,64], index: 1, kind: input, shape index: {}]
  %s2 = inlined_call_operand.vmem [shape: f32[1,64], index: 2, kind: input, shape index: {}]
  %s3 = inlined_call_operand.vmem [shape: f32[64,32], index: 3, kind: input, shape index: {}]
  %s4 = inlined_call_operand.vmem [shape: f32[1,32], index: 4, kind: input, shape index: {}]
  %s5 = inlined_call_operand.vmem [shape: f32[32,16], index: 5, kind: input, shape index: {}]
  %s6 = inlined_call_operand.vmem [shape: f32[1,16], index: 6, kind: input, shape index: {}]
  %s7 = inlined_call_operand.vmem [shape: f32[1,16], index: 7, kind: input, shape index: {}]
  %s8 = inlined_call_operand.<no memory space> [shape: f32[1,1], index: 8, kind: input, shape index: {}]
  %s9 = inlined_call_operand.hbm [shape: f32[1,8], index: 9, kind: output, shape index: {}]
  %s10 = sld [smem:[#allocation0]]
  $region46: #{tpu_custom_call.1} parent=0
    _
  %s12 = ssub.s32 1, %s10
  %s13 = scalar_select 0, %s12, %s10
  %v14 = vstv %s8
  %15 = vst [vmem:[#allocation2] sm:$0x1] %v14
  $region1: #{tpu_custom_call.1} parent=0
    #allocation3 [shape = 'u8[512]{0}', space=vmem, size = 0x400, scoped, tag = 'output window, operand 0, single buffered']
    #allocation4 [shape = 's32[1]{0}', space=sflag, size = 0x4, scoped, tag = 'scoped memory for tpu_custom_call.1']
    %16 = vsyncpa [#allocation4], 0
    // Predicated region
    $region2: #{tpu_custom_call.1} parent=1 // pred_check
      _
    $region3: #{tpu_custom_call.1} parent=1 // pred_check_branch
      %18 = sbr.rel (0) target = $region5
    $region4: #{tpu_custom_call.1} parent=1 // pred_region
      _
    $region5: #{tpu_custom_call.1} parent=1 // pred_fallthru
      _
    // Predicated region
    $region6: #{tpu_custom_call.1} parent=1 // pred_check
      _
    $region7: #{tpu_custom_call.1} parent=1 // pred_check_branch
      %20 = sbr.rel (0) target = $region9
    $region8: #{tpu_custom_call.1} parent=1 // pred_region
      _
    $region9: #{tpu_custom_call.1} parent=1 // pred_fallthru
      _
    // Predicated region
    $region10: #{tpu_custom_call.1} parent=1 // pred_check
      _
    $region11: #{tpu_custom_call.1} parent=1 // pred_check_branch
      %22 = sbr.rel (0) target = $region13
    $region12: #{tpu_custom_call.1} parent=1 // pred_region
      _
    $region13: #{tpu_custom_call.1} parent=1 // pred_fallthru
      _
    // Predicated region
    $region14: #{tpu_custom_call.1} parent=1 // pred_check
      _
    $region15: #{tpu_custom_call.1} parent=1 // pred_check_branch
      %24 = sbr.rel (0) target = $region17
    $region16: #{tpu_custom_call.1} parent=1 // pred_region
      _
    $region17: #{tpu_custom_call.1} parent=1 // pred_fallthru
      _
    // Predicated region
    $region18: #{tpu_custom_call.1} parent=1 // pred_check
      _
    $region19: #{tpu_custom_call.1} parent=1 // pred_check_branch
      %26 = sbr.rel (0) target = $region21
    $region20: #{tpu_custom_call.1} parent=1 // pred_region
      _
    $region21: #{tpu_custom_call.1} parent=1 // pred_fallthru
      _
    // Predicated region
    $region22: #{tpu_custom_call.1} parent=1 // pred_check
      _
    $region23: #{tpu_custom_call.1} parent=1 // pred_check_branch
      %28 = sbr.rel (0) target = $region25
    $region24: #{tpu_custom_call.1} parent=1 // pred_region
      _
    $region25: #{tpu_custom_call.1} parent=1 // pred_fallthru
      _
    // Predicated region
    $region26: #{tpu_custom_call.1} parent=1 // pred_check
      _
    $region27: #{tpu_custom_call.1} parent=1 // pred_check_branch
      %30 = sbr.rel (0) target = $region29
    $region28: #{tpu_custom_call.1} parent=1 // pred_region
      _
    $region29: #{tpu_custom_call.1} parent=1 // pred_fallthru
      _
    // Predicated region
    $region30: #{tpu_custom_call.1} parent=1 // pred_check
      _
    $region31: #{tpu_custom_call.1} parent=1 // pred_check_branch
      %32 = sbr.rel (0) target = $region33
    $region32: #{tpu_custom_call.1} parent=1 // pred_region
      _
    $region33: #{tpu_custom_call.1} parent=1 // pred_fallthru
      _
    // Predicated region
    $region34: #{tpu_custom_call.1} parent=1 // pred_check
      _
    $region35: #{tpu_custom_call.1} parent=1 // pred_check_branch
      %34 = sbr.rel (0) target = $region37
    $region36: #{tpu_custom_call.1} parent=1 // pred_region
      _
    $region37: #{tpu_custom_call.1} parent=1 // pred_fallthru
      _
    %v35 = vld [vmem:[%s0] sm:$0xff]
    %v36 = vld [vmem:[%s1] sm:$0xff]
    %v37 = vld [vmem:[%s1 + $0x8] sm:$0xff]
    %v38 = vld [vmem:[%s1 + $0x10] sm:$0xff]
    %v39 = vld [vmem:[%s1 + $0x18] sm:$0xff]
    %v40 = vld [vmem:[%s2] sm:$0x1]
    %v42 = vlaneseq
    %v43 = vshrl.u32 %v42, 7
    %v44 = vsub.s32 0, %v43
    %v45 = vrot.slane %v40, %v44
    %vm47 = vcmask 261120
    %v49 = vsel %vm47, %v35, 0
    %51 = vmatprep.subr.mxu0 0.0
    %52 = vmatpush1.msra.mxu0 0.0
    %53 = vmatprep.subr.mxu0 0.0
    %54 = vmatpush1.msra.mxu0 0.0
    %55 = vmatprep.subr.mxu0 0.0
    %56 = vmatpush1.msra.mxu0 0.0
    %57 = vmatprep.subr.mxu0 0.0
    %58 = vmatpush1.msra.mxu0 0.0
    %59 = vmatprep.subr.mxu0 0.0
    %60 = vmatpush1.msra.mxu0 0.0
    %61 = vmatprep.subr.mxu0 0.0
    %62 = vmatpush1.msra.mxu0 0.0
    %63 = vmatprep.subr.mxu0 0.0
    %64 = vmatpush1.msra.mxu0 0.0
    %65 = vmatprep.subr.mxu0 0.0
    %66 = vmatpush1.msra.mxu0 0.0
    %67 = vmatprep.subr.mxu0 0.0
    %68 = vmatpush1.msra.mxu0 0.0
    %69 = vmatprep.subr.mxu0 0.0
    %70 = vmatpush1.msra.mxu0 0.0
    %71 = vmatprep.subr.mxu0 0.0
    %72 = vmatpush1.msra.mxu0 0.0
    %73 = vmatprep.subr.mxu0 0.0
    %74 = vmatpush1.msra.mxu0 0.0
    %75 = vmatprep.subr.mxu0 0.0
    %76 = vmatpush1.msra.mxu0 %v39
    %77 = vmatprep.subr.mxu0 0.0
    %78 = vmatpush1.msra.mxu0 %v38
    %79 = vmatprep.subr.mxu0 0.0
    %80 = vmatpush1.msra.mxu0 %v37
    %81 = vmatprep.subr.mxu0 0.0
    %82 = vmatpush1.msra.mxu0 %v36
    %83 = vmatprep.subr.mxu0 0.0
    %84 = vmatpush2.msra.mxu0 0.0
    %85 = vmatprep.subr.mxu0 0.0
    %86 = vmatpush2.msra.mxu0 0.0
    %87 = vmatprep.subr.mxu0 0.0
    %88 = vmatpush2.msra.mxu0 0.0
    %89 = vmatprep.subr.mxu0 0.0
    %90 = vmatpush2.msra.mxu0 0.0
    %91 = vmatprep.subr.mxu0 0.0
    %92 = vmatpush2.msra.mxu0 0.0
    %93 = vmatprep.subr.mxu0 0.0
    %94 = vmatpush2.msra.mxu0 0.0
    %95 = vmatprep.subr.mxu0 0.0
    %96 = vmatpush2.msra.mxu0 0.0
    %97 = vmatprep.subr.mxu0 0.0
    %98 = vmatpush2.msra.mxu0 0.0
    %99 = vmatprep.subr.mxu0 0.0
    %100 = vmatpush2.msra.mxu0 0.0
    %101 = vmatprep.subr.mxu0 0.0
    %102 = vmatpush2.msra.mxu0 0.0
    %103 = vmatprep.subr.mxu0 0.0
    %104 = vmatpush2.msra.mxu0 0.0
    %105 = vmatprep.subr.mxu0 0.0
    %106 = vmatpush2.msra.mxu0 0.0
    %107 = vmatprep.subr.mxu0 0.0
    %108 = vmatpush2.msra.mxu0 0.0
    %109 = vmatprep.subr.mxu0 0.0
    %110 = vmatpush2.msra.mxu0 0.0
    %111 = vmatprep.subr.mxu0 0.0
    %112 = vmatpush2.msra.mxu0 0.0
    %113 = vmatprep.subr.mxu0 0.0
    %114 = vmatpush2.msra.mxu0 0.0
    %115 = vmatprep.mubr.f32.mxu0 0.0
    %116 = vmatmul.mubr.f32.gmra.mxu0 %v49
    %v117 = vpop.f32.mrf.mxu0
    %v118 = vadd.f32 %v45, %v117
    %v119 = vpop.f32.mrf.mxu0
    %120 = vdwg.mxu0
    %v121 = vmax.f32 %v118, 0.0
    %v122 = vld [vmem:[%s3] sm:$0xff]
    %v123 = vld [vmem:[%s3 + $0x8] sm:$0xff]
    %v124 = vld [vmem:[%s3 + $0x10] sm:$0xff]
    %v125 = vld [vmem:[%s3 + $0x18] sm:$0xff]
    %v126 = vld [vmem:[%s3 + $0x20] sm:$0xff]
    %v127 = vld [vmem:[%s3 + $0x28] sm:$0xff]
    %v128 = vld [vmem:[%s3 + $0x30] sm:$0xff]
    %v129 = vld [vmem:[%s3 + $0x38] sm:$0xff]
    %v130 = vld [vmem:[%s4] sm:$0x1]
    %v132 = vlaneseq
    %v133 = vshrl.u32 %v132, 7
    %v134 = vsub.s32 0, %v133
    %v135 = vrot.slane %v130, %v134
    %vm137 = vcmask 523264
    %v139 = vsel %vm137, %v121, 0
    %141 = vmatprep.subr.mxu0 0.0
    %142 = vmatpush1.msra.mxu0 0.0
    %143 = vmatprep.subr.mxu0 0.0
    %144 = vmatpush1.msra.mxu0 0.0
    %145 = vmatprep.subr.mxu0 0.0
    %146 = vmatpush1.msra.mxu0 0.0
    %147 = vmatprep.subr.mxu0 0.0
    %148 = vmatpush1.msra.mxu0 0.0
    %149 = vmatprep.subr.mxu0 0.0
    %150 = vmatpush1.msra.mxu0 0.0
    %151 = vmatprep.subr.mxu0 0.0
    %152 = vmatpush1.msra.mxu0 0.0
    %153 = vmatprep.subr.mxu0 0.0
    %154 = vmatpush1.msra.mxu0 0.0
    %155 = vmatprep.subr.mxu0 0.0
    %156 = vmatpush1.msra.mxu0 0.0
    %157 = vmatprep.subr.mxu0 0.0
    %158 = vmatpush1.msra.mxu0 %v129
    %159 = vmatprep.subr.mxu0 0.0
    %160 = vmatpush1.msra.mxu0 %v128
    %161 = vmatprep.subr.mxu0 0.0
    %162 = vmatpush1.msra.mxu0 %v127
    %163 = vmatprep.subr.mxu0 0.0
    %164 = vmatpush1.msra.mxu0 %v126
    %165 = vmatprep.subr.mxu0 0.0
    %166 = vmatpush1.msra.mxu0 %v125
    %167 = vmatprep.subr.mxu0 0.0
    %168 = vmatpush1.msra.mxu0 %v124
    %169 = vmatprep.subr.mxu0 0.0
    %170 = vmatpush1.msra.mxu0 %v123
    %171 = vmatprep.subr.mxu0 0.0
    %172 = vmatpush1.msra.mxu0 %v122
    %173 = vmatprep.subr.mxu0 0.0
    %174 = vmatpush2.msra.mxu0 0.0
    %175 = vmatprep.subr.mxu0 0.0
    %176 = vmatpush2.msra.mxu0 0.0
    %177 = vmatprep.subr.mxu0 0.0
    %178 = vmatpush2.msra.mxu0 0.0
    %179 = vmatprep.subr.mxu0 0.0
    %180 = vmatpush2.msra.mxu0 0.0
    %181 = vmatprep.subr.mxu0 0.0
    %182 = vmatpush2.msra.mxu0 0.0
    %183 = vmatprep.subr.mxu0 0.0
    %184 = vmatpush2.msra.mxu0 0.0
    %185 = vmatprep.subr.mxu0 0.0
    %186 = vmatpush2.msra.mxu0 0.0
    %187 = vmatprep.subr.mxu0 0.0
    %188 = vmatpush2.msra.mxu0 0.0
    %189 = vmatprep.subr.mxu0 0.0
    %190 = vmatpush2.msra.mxu0 0.0
    %191 = vmatprep.subr.mxu0 0.0
    %192 = vmatpush2.msra.mxu0 0.0
    %193 = vmatprep.subr.mxu0 0.0
    %194 = vmatpush2.msra.mxu0 0.0
    %195 = vmatprep.subr.mxu0 0.0
    %196 = vmatpush2.msra.mxu0 0.0
    %197 = vmatprep.subr.mxu0 0.0
    %198 = vmatpush2.msra.mxu0 0.0
    %199 = vmatprep.subr.mxu0 0.0
    %200 = vmatpush2.msra.mxu0 0.0
    %201 = vmatprep.subr.mxu0 0.0
    %202 = vmatpush2.msra.mxu0 0.0
    %203 = vmatprep.subr.mxu0 0.0
    %204 = vmatpush2.msra.mxu0 0.0
    %205 = vmatprep.mubr.f32.mxu0 0.0
    %206 = vmatmul.mubr.f32.gmra.mxu0 %v139
    %v207 = vpop.f32.mrf.mxu0
    %v208 = vadd.f32 %v135, %v207
    %v209 = vpop.f32.mrf.mxu0
    %210 = vdwg.mxu0
    %v211 = vmax.f32 %v208, 0.0
    %v212 = vld [vmem:[%s5] sm:$0xff]
    %v213 = vld [vmem:[%s5 + $0x8] sm:$0xff]
    %v214 = vld [vmem:[%s5 + $0x10] sm:$0xff]
    %v215 = vld [vmem:[%s5 + $0x18] sm:$0xff]
    %v216 = vld [vmem:[%s6] sm:$0x1]
    %v218 = vlaneseq
    %v219 = vshrl.u32 %v218, 7
    %v220 = vsub.s32 0, %v219
    %v221 = vrot.slane %v216, %v220
    %v224 = vsel %vm47, %v211, 0
    %226 = vmatprep.subr.mxu0 0.0
    %227 = vmatpush1.msra.mxu0 0.0
    %228 = vmatprep.subr.mxu0 0.0
    %229 = vmatpush1.msra.mxu0 0.0
    %230 = vmatprep.subr.mxu0 0.0
    %231 = vmatpush1.msra.mxu0 0.0
    %232 = vmatprep.subr.mxu0 0.0
    %233 = vmatpush1.msra.mxu0 0.0
    %234 = vmatprep.subr.mxu0 0.0
    %235 = vmatpush1.msra.mxu0 0.0
    %236 = vmatprep.subr.mxu0 0.0
    %237 = vmatpush1.msra.mxu0 0.0
    %238 = vmatprep.subr.mxu0 0.0
    %239 = vmatpush1.msra.mxu0 0.0
    %240 = vmatprep.subr.mxu0 0.0
    %241 = vmatpush1.msra.mxu0 0.0
    %242 = vmatprep.subr.mxu0 0.0
    %243 = vmatpush1.msra.mxu0 0.0
    %244 = vmatprep.subr.mxu0 0.0
    %245 = vmatpush1.msra.mxu0 0.0
    %246 = vmatprep.subr.mxu0 0.0
    %247 = vmatpush1.msra.mxu0 0.0
    %248 = vmatprep.subr.mxu0 0.0
    %249 = vmatpush1.msra.mxu0 0.0
    %250 = vmatprep.subr.mxu0 0.0
    %251 = vmatpush1.msra.mxu0 %v215
    %252 = vmatprep.subr.mxu0 0.0
    %253 = vmatpush1.msra.mxu0 %v214
    %254 = vmatprep.subr.mxu0 0.0
    %255 = vmatpush1.msra.mxu0 %v213
    %256 = vmatprep.subr.mxu0 0.0
    %257 = vmatpush1.msra.mxu0 %v212
    %258 = vmatprep.subr.mxu0 0.0
    %259 = vmatpush2.msra.mxu0 0.0
    %260 = vmatprep.subr.mxu0 0.0
    %261 = vmatpush2.msra.mxu0 0.0
    %262 = vmatprep.subr.mxu0 0.0
    %263 = vmatpush2.msra.mxu0 0.0
    %264 = vmatprep.subr.mxu0 0.0
    %265 = vmatpush2.msra.mxu0 0.0
    %266 = vmatprep.subr.mxu0 0.0
    %267 = vmatpush2.msra.mxu0 0.0
    %268 = vmatprep.subr.mxu0 0.0
    %269 = vmatpush2.msra.mxu0 0.0
    %270 = vmatprep.subr.mxu0 0.0
    %271 = vmatpush2.msra.mxu0 0.0
    %272 = vmatprep.subr.mxu0 0.0
    %273 = vmatpush2.msra.mxu0 0.0
    %274 = vmatprep.subr.mxu0 0.0
    %275 = vmatpush2.msra.mxu0 0.0
    %276 = vmatprep.subr.mxu0 0.0
    %277 = vmatpush2.msra.mxu0 0.0
    %278 = vmatprep.subr.mxu0 0.0
    %279 = vmatpush2.msra.mxu0 0.0
    %280 = vmatprep.subr.mxu0 0.0
    %281 = vmatpush2.msra.mxu0 0.0
    %282 = vmatprep.subr.mxu0 0.0
    %283 = vmatpush2.msra.mxu0 0.0
    %284 = vmatprep.subr.mxu0 0.0
    %285 = vmatpush2.msra.mxu0 0.0
    %286 = vmatprep.subr.mxu0 0.0
    %287 = vmatpush2.msra.mxu0 0.0
    %288 = vmatprep.subr.mxu0 0.0
    %289 = vmatpush2.msra.mxu0 0.0
    %290 = vmatprep.mubr.f32.mxu0 0.0
    %291 = vmatmul.mubr.f32.gmra.mxu0 %v224
    %v292 = vpop.f32.mrf.mxu0
    %v293 = vadd.f32 %v221, %v292
    %v294 = vpop.f32.mrf.mxu0
    %295 = vdwg.mxu0
    %v296 = vmax.f32 %v293, 0.0
    %v297 = vld [vmem:[%s7] sm:$0x1]
    %v298 = vld [vmem:[#allocation2] sm:$0x1]
    %300 = vset.pattern.permute.xlu0 0
    %301 = vperm.xlu0 %300, %v298
    %v302 = vpop.permute.xlu0 %301
    %v304 = vlaneseq
    %v305 = vshrl.u32 %v304, 7
    %v306 = vsub.s32 0, %v305
    %v307 = vrot.slane %v302, %v306
    %vm308 = vcmask 130048
    %v310 = vsel %vm308, %v297, 0
    %v313 = vsel %vm308, %v296, 0
    %315 = vmatprep.subr.mxu0 0.0
    %316 = vmatpush1.xpose.msra.mxu0 0.0
    %317 = vmatprep.subr.mxu0 0.0
    %318 = vmatpush1.xpose.msra.mxu0 0.0
    %319 = vmatprep.subr.mxu0 0.0
    %320 = vmatpush1.xpose.msra.mxu0 0.0
    %321 = vmatprep.subr.mxu0 0.0
    %322 = vmatpush1.xpose.msra.mxu0 0.0
    %323 = vmatprep.subr.mxu0 0.0
    %324 = vmatpush1.xpose.msra.mxu0 0.0
    %325 = vmatprep.subr.mxu0 0.0
    %326 = vmatpush1.xpose.msra.mxu0 0.0
    %327 = vmatprep.subr.mxu0 0.0
    %328 = vmatpush1.xpose.msra.mxu0 0.0
    %329 = vmatprep.subr.mxu0 0.0
    %330 = vmatpush1.xpose.msra.mxu0 0.0
    %331 = vmatprep.subr.mxu0 0.0
    %332 = vmatpush1.xpose.msra.mxu0 0.0
    %333 = vmatprep.subr.mxu0 0.0
    %334 = vmatpush1.xpose.msra.mxu0 0.0
    %335 = vmatprep.subr.mxu0 0.0
    %336 = vmatpush1.xpose.msra.mxu0 0.0
    %337 = vmatprep.subr.mxu0 0.0
    %338 = vmatpush1.xpose.msra.mxu0 0.0
    %339 = vmatprep.subr.mxu0 0.0
    %340 = vmatpush1.xpose.msra.mxu0 0.0
    %341 = vmatprep.subr.mxu0 0.0
    %342 = vmatpush1.xpose.msra.mxu0 0.0
    %343 = vmatprep.subr.mxu0 0.0
    %344 = vmatpush1.xpose.msra.mxu0 0.0
    %345 = vmatprep.subr.mxu0 0.0
    %346 = vmatpush1.xpose.msra.mxu0 %v313
    %347 = vmatprep.subr.mxu0 0.0
    %348 = vmatpush2.xpose.msra.mxu0 0.0
    %349 = vmatprep.subr.mxu0 0.0
    %350 = vmatpush2.xpose.msra.mxu0 0.0
    %351 = vmatprep.subr.mxu0 0.0
    %352 = vmatpush2.xpose.msra.mxu0 0.0
    %353 = vmatprep.subr.mxu0 0.0
    %354 = vmatpush2.xpose.msra.mxu0 0.0
    %355 = vmatprep.subr.mxu0 0.0
    %356 = vmatpush2.xpose.msra.mxu0 0.0
    %357 = vmatprep.subr.mxu0 0.0
    %358 = vmatpush2.xpose.msra.mxu0 0.0
    %359 = vmatprep.subr.mxu0 0.0
    %360 = vmatpush2.xpose.msra.mxu0 0.0
    %361 = vmatprep.subr.mxu0 0.0
    %362 = vmatpush2.xpose.msra.mxu0 0.0
    %363 = vmatprep.subr.mxu0 0.0
    %364 = vmatpush2.xpose.msra.mxu0 0.0
    %365 = vmatprep.subr.mxu0 0.0
    %366 = vmatpush2.xpose.msra.mxu0 0.0
    %367 = vmatprep.subr.mxu0 0.0
    %368 = vmatpush2.xpose.msra.mxu0 0.0
    %369 = vmatprep.subr.mxu0 0.0
    %370 = vmatpush2.xpose.msra.mxu0 0.0
    %371 = vmatprep.subr.mxu0 0.0
    %372 = vmatpush2.xpose.msra.mxu0 0.0
    %373 = vmatprep.subr.mxu0 0.0
    %374 = vmatpush2.xpose.msra.mxu0 0.0
    %375 = vmatprep.subr.mxu0 0.0
    %376 = vmatpush2.xpose.msra.mxu0 0.0
    %377 = vmatprep.subr.mxu0 0.0
    %378 = vmatpush2.xpose.msra.mxu0 0.0
    %379 = vmatprep.mubr.f32.mxu0 0.0
    %380 = vmatmul.mubr.f32.gmra.mxu0 %v310
    %v381 = vpop.f32.mrf.mxu0
    %v382 = vadd.f32 %v307, %v381
    %v383 = vpop.f32.mrf.mxu0
    %384 = vdwg.mxu0
    %vm385 = vcmask 57344
    %386 = vst.msk [vmem:[#allocation3] sm:$0x1] %vm385, %v382
    // Predicated region
    $region38: #{tpu_custom_call.1} parent=1 // pred_check
      _
    $region39: #{tpu_custom_call.1} parent=1 // pred_check_branch
      %388 = sbr.rel (0) target = $region41
    $region40: #{tpu_custom_call.1} parent=1 // pred_region
      %s390 = ssub.s32 16, 16
      %391 = vsyncadd [#allocation4], %s390
      %s393 = sshll.u32 [#allocation3], 4
      %s394 = int_to_ptr.vmem [resolvable:$true] %s393
      %396 = dma.vmem_to_hbm [thread:$0]  %s394, 16, %s9, [#allocation4]
    $region41: #{tpu_custom_call.1} parent=1 // pred_fallthru
      _
    // Predicated region
    $region42: #{tpu_custom_call.1} parent=1 // pred_check
      _
    $region43: #{tpu_custom_call.1} parent=1 // pred_check_branch
      %398 = sbr.rel (0) target = $region45
    $region44: #{tpu_custom_call.1} parent=1 // pred_region
      %399 = dma.done [#allocation4], 16
    $region45: #{tpu_custom_call.1} parent=1 // pred_fallthru
      _
    %400 = vsyncpa [#allocation4], 1

</llo_original>
